<compile_context>
chip_gen: v5e
topology: v5e:2x2
jax: 0.10.0
libtpu: 0.0.40
codegen_flags: <defaults>
</compile_context>

<pallas_src>
import jax
import jax.numpy as jnp
from jax.experimental import pallas as pl
from jax.experimental.pallas import tpu as pltpu

IN_FEATURES = 1984
HIDDEN1 = 128
HIDDEN2 = 64
NUM_CLASSES = 6
BN_EPS = 1e-5
LRELU_SLOPE = 0.01          # nn.LeakyReLU() default negative_slope

H1 = 128                    # hidden1 — already lane-dense
H2_PAD = 128                # hidden2 64  -> 128 (zero cols): lane-dense vregs / MXU
OUT_PAD = 128               # classes 6   -> 128 (zero cols): unmasked vst; slice on host
TB_MAX = 1024               # max batch-tile rows: 2 x (1024*1984*4 B) = 15.5 MiB x buffers


def _cdiv(a, b):
    return -(-a // b)


def _round_up(x, m):
    return _cdiv(x, m) * m


def fault_classifier_kernel(x_ref, w1_ref, b1_ref, w2_ref, b2_ref, w3_ref, b3_ref, o_ref):
    # Dropout layers are identity in eval mode -> no-op here.
    # x arrives as f32; cast to bf16 right before the MXU (cheaper than a
    # standalone host-side cast pass that doubles HBM traffic).
    x = x_ref[...].astype(jnp.bfloat16)

    # linear1 + folded BN1 + LeakyReLU (bf16 matmul, f32 accumulate/epilogue)
    h1 = jnp.dot(x, w1_ref[...], preferred_element_type=jnp.float32) + b1_ref[...]
    h1 = jnp.where(h1 > 0, h1, LRELU_SLOPE * h1)

    # linear2 + folded BN2 + LeakyReLU
    h2 = jnp.dot(h1.astype(jnp.bfloat16), w2_ref[...],
                 preferred_element_type=jnp.float32) + b2_ref[...]
    h2 = jnp.where(h2 > 0, h2, LRELU_SLOPE * h2)

    # linear3 (lane-dense padded head); store as bf16 to halve writeback bytes
    y = jnp.dot(h2.astype(jnp.bfloat16), w3_ref[...],
                preferred_element_type=jnp.float32) + b3_ref[...]
    o_ref[...] = y.astype(o_ref.dtype)


def fold_and_pad_params(p):
    """Fold BN running stats + bias into the linears; pad H2 / classes to 128 lanes."""
    s1 = p["g1"] / jnp.sqrt(p["v1"] + BN_EPS)                    # (1, 128)
    w1 = p["w1"] * s1                                            # (1984, 128)  -- no K pad
    b1 = (p["b1"] - p["m1"]) * s1 + p["be1"]                     # (1, 128)

    s2 = p["g2"] / jnp.sqrt(p["v2"] + BN_EPS)                    # (1, 64)
    w2 = p["w2"] * s2                                            # (128, 64)
    b2 = (p["b2"] - p["m2"]) * s2 + p["be2"]                     # (1, 64)

    w3, b3 = p["w3"], p["b3"]                                    # (64, 6), (1, 6)

    # Zero-pad H2 64->128 and classes 6->128 (exact no-ops through matmul / LeakyReLU).
    w2 = jnp.pad(w2, ((0, 0), (0, H2_PAD - HIDDEN2)))
    b2 = jnp.pad(b2, ((0, 0), (0, H2_PAD - HIDDEN2)))
    w3 = jnp.pad(w3, ((0, H2_PAD - HIDDEN2), (0, OUT_PAD - NUM_CLASSES)))
    b3 = jnp.pad(b3, ((0, 0), (0, OUT_PAD - NUM_CLASSES)))

    return dict(
        w1=w1.astype(jnp.bfloat16), b1=b1.astype(jnp.float32),
        w2=w2.astype(jnp.bfloat16), b2=b2.astype(jnp.float32),
        w3=w3.astype(jnp.bfloat16), b3=b3.astype(jnp.float32),
    )


def _choose_batch_tiling(B):
    """Pick (tile_rows, num_tiles).

    >= 2 tiles whenever B > 8 so both v7x TensorCores get work on the
    'parallel' grid axis; tile capped at TB_MAX rows so the double-buffered
    f32 x stream stays well inside every generation's scoped VMEM.
    """
    if B <= 8:
        n_tiles = 1
    else:
        n_tiles = max(2, _cdiv(B, TB_MAX))
    tb = _round_up(_cdiv(B, n_tiles), 8)
    return tb, n_tiles


def fault_classifier(x, params):
    """x: [B, 1984] float32.  params: dict of weights (see init_params)."""
    B = x.shape[0]
    fp = fold_and_pad_params(params)

    tb, n_tiles = _choose_batch_tiling(B)
    b_pad = tb * n_tiles
    if b_pad != B:                      # only pad the (small) batch remainder
        x = jnp.pad(x, ((0, b_pad - B), (0, 0)))

    flops = 2 * b_pad * (IN_FEATURES * H1 + H1 * H2_PAD + H2_PAD * OUT_PAD)
    bytes_accessed = (
        b_pad * IN_FEATURES * 4                                  # f32 x stream
        + (fp["w1"].size + fp["w2"].size + fp["w3"].size) * 2    # bf16 weights
        + (fp["b1"].size + fp["b2"].size + fp["b3"].size) * 4    # f32 biases
        + b_pad * OUT_PAD * 2                                    # bf16 output
    )

    out = pl.pallas_call(
        fault_classifier_kernel,
        out_shape=jax.ShapeDtypeStruct((b_pad, OUT_PAD), jnp.bfloat16),
        grid_spec=pltpu.PrefetchScalarGridSpec(
            num_scalar_prefetch=0,
            grid=(n_tiles,),
            in_specs=[
                # x tile streamed as f32 (last block dim == full array dim).
                pl.BlockSpec((tb, IN_FEATURES), lambda i: (i, 0)),
                pl.BlockSpec((IN_FEATURES, H1), lambda i: (0, 0)),  # W1' (resident)
                pl.BlockSpec((1, H1), lambda i: (0, 0)),            # b1'
                pl.BlockSpec((H1, H2_PAD), lambda i: (0, 0)),       # W2'
                pl.BlockSpec((1, H2_PAD), lambda i: (0, 0)),        # b2'
                pl.BlockSpec((H2_PAD, OUT_PAD), lambda i: (0, 0)),  # W3 (padded)
                pl.BlockSpec((1, OUT_PAD), lambda i: (0, 0)),       # b3 (padded)
            ],
            out_specs=pl.BlockSpec((tb, OUT_PAD), lambda i: (i, 0)),
        ),
        compiler_params=pltpu.CompilerParams(
            dimension_semantics=("parallel",),   # batch tiles shard across TCs (v7x)
            vmem_limit_bytes=48 * 1024 * 1024,   # actual use ~22 MiB at tb=1024; safe on all gens
        ),
        cost_estimate=pl.CostEstimate(
            flops=flops, transcendentals=0, bytes_accessed=bytes_accessed),
    )(x, fp["w1"], fp["b1"], fp["w2"], fp["b2"], fp["w3"], fp["b3"])

    return out[:B, :NUM_CLASSES].astype(jnp.float32)


def init_params(key):
    """Deterministic synthetic parameters matching the nn.Module shapes."""
    ks = jax.random.split(key, 16)

    def lin(kw, kb, fan_in, fan_out):
        # Stored as [in, out] (transposed vs PyTorch nn.Linear.weight).
        bound = 1.0 / jnp.sqrt(jnp.float32(fan_in))
        w = jax.random.uniform(kw, (fan_in, fan_out), jnp.float32, -bound, bound)
        b = jax.random.uniform(kb, (1, fan_out), jnp.float32, -bound, bound)
        return w, b

    w1, b1 = lin(ks[0], ks[1], IN_FEATURES, HIDDEN1)
    w2, b2 = lin(ks[2], ks[3], HIDDEN1, HIDDEN2)
    w3, b3 = lin(ks[4], ks[5], HIDDEN2, NUM_CLASSES)

    def bn(kg, kb, km, kv, feat):
        g = 1.0 + 0.1 * jax.random.normal(kg, (1, feat), jnp.float32)
        be = 0.1 * jax.random.normal(kb, (1, feat), jnp.float32)
        m = 0.1 * jax.random.normal(km, (1, feat), jnp.float32)
        v = jax.random.uniform(kv, (1, feat), jnp.float32, 0.5, 1.5)
        return g, be, m, v

    g1, be1, m1, v1 = bn(ks[6], ks[7], ks[8], ks[9], HIDDEN1)
    g2, be2, m2, v2 = bn(ks[10], ks[11], ks[12], ks[13], HIDDEN2)

    return dict(
        w1=w1, b1=b1, g1=g1, be1=be1, m1=m1, v1=v1,
        w2=w2, b2=b2, g2=g2, be2=be2, m2=m2, v2=v2,
        w3=w3, b3=b3,
    )


def reference_forward_f32(x, p):
    """Pure-JAX f32 reference of the module's eval forward pass."""
    h1 = x @ p["w1"] + p["b1"]
    h1 = (h1 - p["m1"]) / jnp.sqrt(p["v1"] + BN_EPS) * p["g1"] + p["be1"]
    h1 = jnp.where(h1 > 0, h1, LRELU_SLOPE * h1)
    h2 = h1 @ p["w2"] + p["b2"]
    h2 = (h2 - p["m2"]) / jnp.sqrt(p["v2"] + BN_EPS) * p["g2"] + p["be2"]
    h2 = jnp.where(h2 > 0, h2, LRELU_SLOPE * h2)
    return h2 @ p["w3"] + p["b3"]


def reference_forward_bf16(x, p):
    """Reference that mimics the kernel's BN folding + bf16 matmul inputs."""
    s1 = p["g1"] / jnp.sqrt(p["v1"] + BN_EPS)
    w1 = (p["w1"] * s1).astype(jnp.bfloat16)
    b1 = (p["b1"] - p["m1"]) * s1 + p["be1"]
    s2 = p["g2"] / jnp.sqrt(p["v2"] + BN_EPS)
    w2 = (p["w2"] * s2).astype(jnp.bfloat16)
    b2 = (p["b2"] - p["m2"]) * s2 + p["be2"]
    h1 = jnp.dot(x.astype(jnp.bfloat16), w1, preferred_element_type=jnp.float32) + b1
    h1 = jnp.where(h1 > 0, h1, LRELU_SLOPE * h1)
    h2 = jnp.dot(h1.astype(jnp.bfloat16), w2, preferred_element_type=jnp.float32) + b2
    h2 = jnp.where(h2 > 0, h2, LRELU_SLOPE * h2)
    return jnp.dot(h2.astype(jnp.bfloat16), p["w3"].astype(jnp.bfloat16),
                   preferred_element_type=jnp.float32) + p["b3"]


if __name__ == "__main__":
    key = jax.random.PRNGKey(0)
    k_param, k_x = jax.random.split(key)

    B = 8  # small sublane-aligned batch for the smoke test
    params = init_params(k_param)
    x = jax.random.normal(k_x, (B, IN_FEATURES), jnp.float32)

    # NOTE: Dropout(0.2) is identity in eval mode; training-mode dropout masks are
    # intentionally not part of this inference kernel.
    out = jax.block_until_ready(fault_classifier(x, params))
    assert out.shape == (B, NUM_CLASSES)

    # Check against a bf16-input reference (same precision recipe as the kernel,
    # modulo the final bf16 store -> slightly looser than before).
    ref_bf16 = reference_forward_bf16(x, params)
    assert jnp.allclose(out, ref_bf16, atol=1e-2, rtol=1e-2), (
        float(jnp.max(jnp.abs(out - ref_bf16))))

    # Loose sanity check against the full-f32 module forward.
    ref_f32 = reference_forward_f32(x, params)
    assert jnp.allclose(out, ref_f32, atol=6e-2, rtol=6e-2), (
        float(jnp.max(jnp.abs(out - ref_f32))))

    print("KERNEL_OK")
</pallas_src>

<mosaic_0001>
module attributes {stable_mosaic.version = 11 : i64} {
  func.func @fault_classifier_kernel(%arg0: i32, %arg1: memref<8x1984xf32, #tpu.memory_space<vmem>>, %arg2: memref<1984x128xbf16, #tpu.memory_space<vmem>>, %arg3: memref<1x128xf32, #tpu.memory_space<vmem>>, %arg4: memref<128x128xbf16, #tpu.memory_space<vmem>>, %arg5: memref<1x128xf32, #tpu.memory_space<vmem>>, %arg6: memref<128x128xbf16, #tpu.memory_space<vmem>>, %arg7: memref<1x128xf32, #tpu.memory_space<vmem>>, %arg8: memref<8x128xbf16, #tpu.memory_space<vmem>>) attributes {dimension_semantics = [#tpu.dimension_semantics<parallel>], iteration_bounds = array<i64: 1>, scalar_prefetch = 0 : i64, scratch_operands = 0 : i64, tpu.core_type = #tpu.core_type<tc>, window_params = [{transform_indices = @transform_0, window_bounds = array<i64: 8, 1984>}, {pipeline_mode = #tpu.pipeline_mode<synchronous>, transform_indices = @transform_1, window_bounds = array<i64: 1984, 128>}, {pipeline_mode = #tpu.pipeline_mode<synchronous>, transform_indices = @transform_2, window_bounds = array<i64: 1, 128>}, {pipeline_mode = #tpu.pipeline_mode<synchronous>, transform_indices = @transform_3, window_bounds = array<i64: 128, 128>}, {pipeline_mode = #tpu.pipeline_mode<synchronous>, transform_indices = @transform_4, window_bounds = array<i64: 1, 128>}, {pipeline_mode = #tpu.pipeline_mode<synchronous>, transform_indices = @transform_5, window_bounds = array<i64: 128, 128>}, {pipeline_mode = #tpu.pipeline_mode<synchronous>, transform_indices = @transform_6, window_bounds = array<i64: 1, 128>}, {transform_indices = @transform_7, window_bounds = array<i64: 8, 128>}]} {
    %c0 = arith.constant 0 : index
    %c0_0 = arith.constant 0 : index
    %0 = vector.load %arg1[%c0, %c0_0] : memref<8x1984xf32, #tpu.memory_space<vmem>>, vector<8x1984xf32>
    %1 = arith.truncf %0 : vector<8x1984xf32> to vector<8x1984xbf16>
    %c0_1 = arith.constant 0 : index
    %c0_2 = arith.constant 0 : index
    %2 = vector.load %arg2[%c0_1, %c0_2] : memref<1984x128xbf16, #tpu.memory_space<vmem>>, vector<1984x128xbf16>
    %cst = arith.constant dense<0.000000e+00> : vector<8x128xf32>
    %3 = tpu.matmul %1, %2, %cst {dimension_numbers = #tpu.dot_dimension_numbers<[1], [0], [0], [1], [0, 0, 1, 1], [], []>} : vector<8x1984xbf16>, vector<1984x128xbf16>, vector<8x128xf32> -> vector<8x128xf32>
    %c0_3 = arith.constant 0 : index
    %c0_4 = arith.constant 0 : index
    %4 = vector.load %arg3[%c0_3, %c0_4] : memref<1x128xf32, #tpu.memory_space<vmem>>, vector<1x128xf32>
    %5 = vector.broadcast %4 : vector<1x128xf32> to vector<8x128xf32>
    %6 = arith.addf %3, %5 : vector<8x128xf32>
    %cst_5 = arith.constant 0.000000e+00 : f32
    %7 = vector.broadcast %cst_5 : f32 to vector<8x128xf32>
    %8 = arith.cmpf ogt, %6, %7 : vector<8x128xf32>
    %cst_6 = arith.constant 0.00999999977 : f32
    %9 = vector.broadcast %cst_6 : f32 to vector<8x128xf32>
    %10 = arith.mulf %9, %6 : vector<8x128xf32>
    %11 = arith.select %8, %6, %10 : vector<8x128xi1>, vector<8x128xf32>
    %12 = arith.truncf %11 : vector<8x128xf32> to vector<8x128xbf16>
    %c0_7 = arith.constant 0 : index
    %c0_8 = arith.constant 0 : index
    %13 = vector.load %arg4[%c0_7, %c0_8] : memref<128x128xbf16, #tpu.memory_space<vmem>>, vector<128x128xbf16>
    %cst_9 = arith.constant dense<0.000000e+00> : vector<8x128xf32>
    %14 = tpu.matmul %12, %13, %cst_9 {dimension_numbers = #tpu.dot_dimension_numbers<[1], [0], [0], [1], [0, 0, 1, 1], [], []>} : vector<8x128xbf16>, vector<128x128xbf16>, vector<8x128xf32> -> vector<8x128xf32>
    %c0_10 = arith.constant 0 : index
    %c0_11 = arith.constant 0 : index
    %15 = vector.load %arg5[%c0_10, %c0_11] : memref<1x128xf32, #tpu.memory_space<vmem>>, vector<1x128xf32>
    %16 = vector.broadcast %15 : vector<1x128xf32> to vector<8x128xf32>
    %17 = arith.addf %14, %16 : vector<8x128xf32>
    %cst_12 = arith.constant 0.000000e+00 : f32
    %18 = vector.broadcast %cst_12 : f32 to vector<8x128xf32>
    %19 = arith.cmpf ogt, %17, %18 : vector<8x128xf32>
    %cst_13 = arith.constant 0.00999999977 : f32
    %20 = vector.broadcast %cst_13 : f32 to vector<8x128xf32>
    %21 = arith.mulf %20, %17 : vector<8x128xf32>
    %22 = arith.select %19, %17, %21 : vector<8x128xi1>, vector<8x128xf32>
    %23 = arith.truncf %22 : vector<8x128xf32> to vector<8x128xbf16>
    %c0_14 = arith.constant 0 : index
    %c0_15 = arith.constant 0 : index
    %24 = vector.load %arg6[%c0_14, %c0_15] : memref<128x128xbf16, #tpu.memory_space<vmem>>, vector<128x128xbf16>
    %cst_16 = arith.constant dense<0.000000e+00> : vector<8x128xf32>
    %25 = tpu.matmul %23, %24, %cst_16 {dimension_numbers = #tpu.dot_dimension_numbers<[1], [0], [0], [1], [0, 0, 1, 1], [], []>} : vector<8x128xbf16>, vector<128x128xbf16>, vector<8x128xf32> -> vector<8x128xf32>
    %c0_17 = arith.constant 0 : index
    %c0_18 = arith.constant 0 : index
    %26 = vector.load %arg7[%c0_17, %c0_18] : memref<1x128xf32, #tpu.memory_space<vmem>>, vector<1x128xf32>
    %27 = vector.broadcast %26 : vector<1x128xf32> to vector<8x128xf32>
    %28 = arith.addf %25, %27 : vector<8x128xf32>
    %29 = arith.truncf %28 : vector<8x128xf32> to vector<8x128xbf16>
    %c0_19 = arith.constant 0 : index
    %c0_20 = arith.constant 0 : index
    %30 = vector.load %arg8[%c0_19, %c0_20] : memref<8x128xbf16, #tpu.memory_space<vmem>>, vector<8x128xbf16>
    tpu.vector_store %arg8[%c0_19, %c0_20], %29 {strides = array<i32>} : memref<8x128xbf16, #tpu.memory_space<vmem>>, vector<8x128xbf16>,
    return
  }
  func.func @transform_0(%arg0: i32) -> (i32, i32) {
    %c0_i32 = arith.constant 0 : i32
    %c0_i32_0 = arith.constant 0 : i32
    return %arg0, %c0_i32 : i32, i32
  }
  func.func @transform_1(%arg0: i32) -> (i32, i32) {
    %c0_i32 = arith.constant 0 : i32
    %c0_i32_0 = arith.constant 0 : i32
    %c0_i32_1 = arith.constant 0 : i32
    return %c0_i32, %c0_i32_0 : i32, i32
  }
  func.func @transform_2(%arg0: i32) -> (i32, i32) {
    %c0_i32 = arith.constant 0 : i32
    %c0_i32_0 = arith.constant 0 : i32
    %c0_i32_1 = arith.constant 0 : i32
    return %c0_i32, %c0_i32_0 : i32, i32
  }
  func.func @transform_3(%arg0: i32) -> (i32, i32) {
    %c0_i32 = arith.constant 0 : i32
    %c0_i32_0 = arith.constant 0 : i32
    %c0_i32_1 = arith.constant 0 : i32
    return %c0_i32, %c0_i32_0 : i32, i32
  }
  func.func @transform_4(%arg0: i32) -> (i32, i32) {
    %c0_i32 = arith.constant 0 : i32
    %c0_i32_0 = arith.constant 0 : i32
    %c0_i32_1 = arith.constant 0 : i32
    return %c0_i32, %c0_i32_0 : i32, i32
  }
  func.func @transform_5(%arg0: i32) -> (i32, i32) {
    %c0_i32 = arith.constant 0 : i32
    %c0_i32_0 = arith.constant 0 : i32
    %c0_i32_1 = arith.constant 0 : i32
    return %c0_i32, %c0_i32_0 : i32, i32
  }
  func.func @transform_6(%arg0: i32) -> (i32, i32) {
    %c0_i32 = arith.constant 0 : i32
    %c0_i32_0 = arith.constant 0 : i32
    %c0_i32_1 = arith.constant 0 : i32
    return %c0_i32, %c0_i32_0 : i32, i32
  }
  func.func @transform_7(%arg0: i32) -> (i32, i32) {
    %c0_i32 = arith.constant 0 : i32
    %c0_i32_0 = arith.constant 0 : i32
    return %arg0, %c0_i32 : i32, i32
  }
}

</mosaic_0001>

<llo_original>
// kernel: tpu_custom_call.1
$region0: #{tpu_custom_call.1}
  #allocation0 [shape = 'u32[]', space=smem, size = 0x4, offset = 0x4, fixed_abs, tag = 'smem constant byte address 0x4 - core index']
  #allocation1 [shape = 'u32[72,128]{1,0:T(1,128)}', space=vmem, size = 0x9000, scoped, tag = 'internal scratch']
  %s0 = inlined_call_operand.hbm [shape: f32[8,1984], index: 0, kind: input, shape index: {}]
  %s1 = inlined_call_operand.hbm [shape: bf16[1984,128], index: 1, kind: input, shape index: {}]
  %s2 = inlined_call_operand.vmem [shape: f32[1,128], index: 2, kind: input, shape index: {}]
  %s3 = inlined_call_operand.hbm [shape: bf16[128,128], index: 3, kind: input, shape index: {}]
  %s4 = inlined_call_operand.vmem [shape: f32[1,128], index: 4, kind: input, shape index: {}]
  %s5 = inlined_call_operand.hbm [shape: bf16[128,128], index: 5, kind: input, shape index: {}]
  %s6 = inlined_call_operand.vmem [shape: f32[1,128], index: 6, kind: input, shape index: {}]
  %s7 = inlined_call_operand.hbm [shape: bf16[8,128], index: 7, kind: output, shape index: {}]
  %s8 = sld [smem:[#allocation0]]
  $region54: #{tpu_custom_call.1} parent=0
    _
  %s10 = ssub.s32 1, %s8
  %s11 = scalar_select 0, %s10, %s8
  $region1: #{tpu_custom_call.1} parent=0
    #allocation2 [shape = 'u8[65536]{0}', space=vmem, size = 0x10000, scoped, tag = 'input window, operand 0, single buffered']
    #allocation3 [shape = 's32[1]{0}', space=sflag, size = 0x4, scoped, tag = 'scoped memory for tpu_custom_call.1']
    #allocation4 [shape = 's32[1]{0}', space=sflag, size = 0x4, scoped, tag = 'scoped memory for tpu_custom_call.1']
    #allocation5 [shape = 'u8[507904]{0}', space=vmem, size = 0x7c000, scoped, tag = 'input window, operand 1, single buffered']
    #allocation6 [shape = 's32[1]{0}', space=sflag, size = 0x4, scoped, tag = 'scoped memory for tpu_custom_call.1']
    #allocation7 [shape = 'u8[32768]{0}', space=vmem, size = 0x8000, scoped, tag = 'input window, operand 3, single buffered']
    #allocation8 [shape = 'u8[32768]{0}', space=vmem, size = 0x8000, scoped, tag = 'input window, operand 5, single buffered']
    #allocation9 [shape = 's32[1]{0}', space=sflag, size = 0x4, scoped, tag = 'scoped memory for tpu_custom_call.1']
    #allocation10 [shape = 'u8[2048]{0}', space=vmem, size = 0x800, scoped, tag = 'output window, operand 0, single buffered']
    %12 = vsyncpa [#allocation3], 0
    %13 = vsyncpa [#allocation6], 0
    %14 = vsyncpa [#allocation9], 0
    %15 = vsyncpa [#allocation4], 0
    // Predicated region
    $region2: #{tpu_custom_call.1} parent=1 // pred_check
      _
    $region3: #{tpu_custom_call.1} parent=1 // pred_check_branch
      %17 = sbr.rel (0) target = $region5
    $region4: #{tpu_custom_call.1} parent=1 // pred_region
      %19 = vsyncadd [#allocation3], 0
      %s21 = sshll.u32 %s0, 4
      %s22 = int_to_ptr.hbm [resolvable:$true] %s21
      %s23 = sshll.u32 [#allocation2], 4
      %s24 = int_to_ptr.vmem [resolvable:$true] %s23
      %26 = dma.hbm_to_vmem [thread:$0]  %s22, 2048, %s24, [#allocation3]
    $region5: #{tpu_custom_call.1} parent=1 // pred_fallthru
      _
    // Predicated region
    $region6: #{tpu_custom_call.1} parent=1 // pred_check
      _
    $region7: #{tpu_custom_call.1} parent=1 // pred_check_branch
      %28 = sbr.rel (0) target = $region9
    $region8: #{tpu_custom_call.1} parent=1 // pred_region
      %30 = vsyncadd [#allocation6], 0
      %s31 = sshll.u32 %s1, 4
      %s32 = int_to_ptr.hbm [resolvable:$true] %s31
      %s33 = sshll.u32 [#allocation5], 4
      %s34 = int_to_ptr.vmem [resolvable:$true] %s33
      %39 = dma.hbm_to_vmem [thread:$0]  %s32, 15872, %s34, [#allocation6], 64, 64, 4
    $region9: #{tpu_custom_call.1} parent=1 // pred_fallthru
      _
    // Predicated region
    $region10: #{tpu_custom_call.1} parent=1 // pred_check
      _
    $region11: #{tpu_custom_call.1} parent=1 // pred_check_branch
      %41 = sbr.rel (0) target = $region13
    $region12: #{tpu_custom_call.1} parent=1 // pred_region
      _
    $region13: #{tpu_custom_call.1} parent=1 // pred_fallthru
      _
    // Predicated region
    $region14: #{tpu_custom_call.1} parent=1 // pred_check
      _
    $region15: #{tpu_custom_call.1} parent=1 // pred_check_branch
      %43 = sbr.rel (0) target = $region17
    $region16: #{tpu_custom_call.1} parent=1 // pred_region
      %45 = vsyncadd [#allocation6], 0
      %s46 = sshll.u32 %s3, 4
      %s47 = int_to_ptr.hbm [resolvable:$true] %s46
      %s48 = sshll.u32 [#allocation7], 4
      %s49 = int_to_ptr.vmem [resolvable:$true] %s48
      %54 = dma.hbm_to_vmem [thread:$0]  %s47, 1024, %s49, [#allocation6], 64, 64, 4
    $region17: #{tpu_custom_call.1} parent=1 // pred_fallthru
      _
    // Predicated region
    $region18: #{tpu_custom_call.1} parent=1 // pred_check
      _
    $region19: #{tpu_custom_call.1} parent=1 // pred_check_branch
      %56 = sbr.rel (0) target = $region21
    $region20: #{tpu_custom_call.1} parent=1 // pred_region
      _
    $region21: #{tpu_custom_call.1} parent=1 // pred_fallthru
      _
    // Predicated region
    $region22: #{tpu_custom_call.1} parent=1 // pred_check
      _
    $region23: #{tpu_custom_call.1} parent=1 // pred_check_branch
      %58 = sbr.rel (0) target = $region25
    $region24: #{tpu_custom_call.1} parent=1 // pred_region
      %60 = vsyncadd [#allocation9], 0
      %s61 = sshll.u32 %s5, 4
      %s62 = int_to_ptr.hbm [resolvable:$true] %s61
      %s63 = sshll.u32 [#allocation8], 4
      %s64 = int_to_ptr.vmem [resolvable:$true] %s63
      %69 = dma.hbm_to_vmem [thread:$0]  %s62, 1024, %s64, [#allocation9], 64, 64, 4
    $region25: #{tpu_custom_call.1} parent=1 // pred_fallthru
      _
    // Predicated region
    $region26: #{tpu_custom_call.1} parent=1 // pred_check
      _
    $region27: #{tpu_custom_call.1} parent=1 // pred_check_branch
      %71 = sbr.rel (0) target = $region29
    $region28: #{tpu_custom_call.1} parent=1 // pred_region
      _
    $region29: #{tpu_custom_call.1} parent=1 // pred_fallthru
      _
    // Predicated region
    $region30: #{tpu_custom_call.1} parent=1 // pred_check
      _
    $region31: #{tpu_custom_call.1} parent=1 // pred_check_branch
      %73 = sbr.rel (0) target = $region33
    $region32: #{tpu_custom_call.1} parent=1 // pred_region
      %75 = dma.done [#allocation3], 2048
    $region33: #{tpu_custom_call.1} parent=1 // pred_fallthru
      _
    // Predicated region
    $region34: #{tpu_custom_call.1} parent=1 // pred_check
      _
    $region35: #{tpu_custom_call.1} parent=1 // pred_check_branch
      %77 = sbr.rel (0) target = $region37
    $region36: #{tpu_custom_call.1} parent=1 // pred_region
      %79 = dma.done [#allocation6], 15872
    $region37: #{tpu_custom_call.1} parent=1 // pred_fallthru
      _
    // Predicated region
    $region38: #{tpu_custom_call.1} parent=1 // pred_check
      _
    $region39: #{tpu_custom_call.1} parent=1 // pred_check_branch
      %81 = sbr.rel (0) target = $region41
    $region40: #{tpu_custom_call.1} parent=1 // pred_region
      %83 = dma.done [#allocation6], 1024
    $region41: #{tpu_custom_call.1} parent=1 // pred_fallthru
      _
    // Predicated region
    $region42: #{tpu_custom_call.1} parent=1 // pred_check
      _
    $region43: #{tpu_custom_call.1} parent=1 // pred_check_branch
      %85 = sbr.rel (0) target = $region45
    $region44: #{tpu_custom_call.1} parent=1 // pred_region
      %87 = dma.done [#allocation9], 1024
    $region45: #{tpu_custom_call.1} parent=1 // pred_fallthru
      _
    %v89 = vld [vmem:[#allocation2] sm:$0xff]
    %v90 = vld [vmem:[#allocation2 + $0x8] sm:$0xff]
    %v91 = vld [vmem:[#allocation2 + $0x10] sm:$0xff]
    %v92 = vld [vmem:[#allocation2 + $0x18] sm:$0xff]
    %v93 = vld [vmem:[#allocation2 + $0x20] sm:$0xff]
    %v94 = vld [vmem:[#allocation2 + $0x28] sm:$0xff]
    %v95 = vld [vmem:[#allocation2 + $0x30] sm:$0xff]
    %v96 = vld [vmem:[#allocation2 + $0x38] sm:$0xff]
    %v97 = vld [vmem:[#allocation2 + $0x40] sm:$0xff]
    %v98 = vld [vmem:[#allocation2 + $0x48] sm:$0xff]
    %v99 = vld [vmem:[#allocation2 + $0x50] sm:$0xff]
    %v100 = vld [vmem:[#allocation2 + $0x58] sm:$0xff]
    %v101 = vld [vmem:[#allocation2 + $0x60] sm:$0xff]
    %v102 = vld [vmem:[#allocation2 + $0x68] sm:$0xff]
    %v103 = vld [vmem:[#allocation2 + $0x70] sm:$0xff]
    %v104 = vld [vmem:[#allocation2 + $0x78] sm:$0xff]
    %v105 = vpack.c.bf16 %v89, %v89
    %v106 = vpack.c.bf16 %v90, %v90
    %v107 = vpack.c.bf16 %v91, %v91
    %v108 = vpack.c.bf16 %v92, %v92
    %v109 = vpack.c.bf16 %v93, %v93
    %v110 = vpack.c.bf16 %v94, %v94
    %v111 = vpack.c.bf16 %v95, %v95
    %v112 = vpack.c.bf16 %v96, %v96
    %v113 = vpack.c.bf16 %v97, %v97
    %v114 = vpack.c.bf16 %v98, %v98
    %v115 = vpack.c.bf16 %v99, %v99
    %v116 = vpack.c.bf16 %v100, %v100
    %v117 = vpack.c.bf16 %v101, %v101
    %v118 = vpack.c.bf16 %v102, %v102
    %v119 = vpack.c.bf16 %v103, %v103
    %v120 = vpack.c.bf16 %v104, %v104
    %v121 = vld [vmem:[#allocation5] sm:$0xf]
    %v122 = vld [vmem:[#allocation5 + $0x4] sm:$0xf]
    %v123 = vld [vmem:[#allocation5 + $0x8] sm:$0xf]
    %v124 = vld [vmem:[#allocation5 + $0xc] sm:$0xf]
    %v125 = vld [vmem:[#allocation5 + $0x10] sm:$0xf]
    %v126 = vld [vmem:[#allocation5 + $0x14] sm:$0xf]
    %v127 = vld [vmem:[#allocation5 + $0x18] sm:$0xf]
    %v128 = vld [vmem:[#allocation5 + $0x1c] sm:$0xf]
    %v129 = vld [vmem:[#allocation5 + $0x20] sm:$0xf]
    %v130 = vld [vmem:[#allocation5 + $0x24] sm:$0xf]
    %v131 = vld [vmem:[#allocation5 + $0x28] sm:$0xf]
    %v132 = vld [vmem:[#allocation5 + $0x2c] sm:$0xf]
    %v133 = vld [vmem:[#allocation5 + $0x30] sm:$0xf]
    %v134 = vld [vmem:[#allocation5 + $0x34] sm:$0xf]
    %v135 = vld [vmem:[#allocation5 + $0x38] sm:$0xf]
    %v136 = vld [vmem:[#allocation5 + $0x3c] sm:$0xf]
    %v137 = vld [vmem:[#allocation5 + $0x40] sm:$0xf]
    %v138 = vld [vmem:[#allocation5 + $0x44] sm:$0xf]
    %v139 = vld [vmem:[#allocation5 + $0x48] sm:$0xf]
    %v140 = vld [vmem:[#allocation5 + $0x4c] sm:$0xf]
    %v141 = vld [vmem:[#allocation5 + $0x50] sm:$0xf]
    %v142 = vld [vmem:[#allocation5 + $0x54] sm:$0xf]
    %v143 = vld [vmem:[#allocation5 + $0x58] sm:$0xf]
    %v144 = vld [vmem:[#allocation5 + $0x5c] sm:$0xf]
    %v145 = vld [vmem:[#allocation5 + $0x60] sm:$0xf]
    %v146 = vld [vmem:[#allocation5 + $0x64] sm:$0xf]
    %v147 = vld [vmem:[#allocation5 + $0x68] sm:$0xf]
    %v148 = vld [vmem:[#allocation5 + $0x6c] sm:$0xf]
    %v149 = vld [vmem:[#allocation5 + $0x70] sm:$0xf]
    %v150 = vld [vmem:[#allocation5 + $0x74] sm:$0xf]
    %v151 = vld [vmem:[#allocation5 + $0x78] sm:$0xf]
    %v152 = vld [vmem:[#allocation5 + $0x7c] sm:$0xf]
    %v153 = vld [vmem:[#allocation5 + $0x80] sm:$0xf]
    %v154 = vld [vmem:[#allocation5 + $0x84] sm:$0xf]
    %v155 = vld [vmem:[#allocation5 + $0x88] sm:$0xf]
    %v156 = vld [vmem:[#allocation5 + $0x8c] sm:$0xf]
    %v157 = vld [vmem:[#allocation5 + $0x90] sm:$0xf]
    %v158 = vld [vmem:[#allocation5 + $0x94] sm:$0xf]
    %v159 = vld [vmem:[#allocation5 + $0x98] sm:$0xf]
    %v160 = vld [vmem:[#allocation5 + $0x9c] sm:$0xf]
    %v161 = vld [vmem:[#allocation5 + $0xa0] sm:$0xf]
    %v162 = vld [vmem:[#allocation5 + $0xa4] sm:$0xf]
    %v163 = vld [vmem:[#allocation5 + $0xa8] sm:$0xf]
    %v164 = vld [vmem:[#allocation5 + $0xac] sm:$0xf]
    %v165 = vld [vmem:[#allocation5 + $0xb0] sm:$0xf]
    %v166 = vld [vmem:[#allocation5 + $0xb4] sm:$0xf]
    %v167 = vld [vmem:[#allocation5 + $0xb8] sm:$0xf]
    %v168 = vld [vmem:[#allocation5 + $0xbc] sm:$0xf]
    %v169 = vld [vmem:[#allocation5 + $0xc0] sm:$0xf]
    %v170 = vld [vmem:[#allocation5 + $0xc4] sm:$0xf]
    %v171 = vld [vmem:[#allocation5 + $0xc8] sm:$0xf]
    %v172 = vld [vmem:[#allocation5 + $0xcc] sm:$0xf]
    %v173 = vld [vmem:[#allocation5 + $0xd0] sm:$0xf]
    %v174 = vld [vmem:[#allocation5 + $0xd4] sm:$0xf]
    %v175 = vld [vmem:[#allocation5 + $0xd8] sm:$0xf]
    %v176 = vld [vmem:[#allocation5 + $0xdc] sm:$0xf]
    %v177 = vld [vmem:[#allocation5 + $0xe0] sm:$0xf]
    %v178 = vld [vmem:[#allocation5 + $0xe4] sm:$0xf]
    %v179 = vld [vmem:[#allocation5 + $0xe8] sm:$0xf]
    %v180 = vld [vmem:[#allocation5 + $0xec] sm:$0xf]
    %v181 = vld [vmem:[#allocation5 + $0xf0] sm:$0xf]
    %v182 = vld [vmem:[#allocation5 + $0xf4] sm:$0xf]
    %v183 = vld [vmem:[#allocation5 + $0xf8] sm:$0xf]
    %v184 = vld [vmem:[#allocation5 + $0xfc] sm:$0xf]
    %v185 = vld [vmem:[#allocation5 + $0x100] sm:$0xf]
    %v186 = vld [vmem:[#allocation5 + $0x104] sm:$0xf]
    %v187 = vld [vmem:[#allocation5 + $0x108] sm:$0xf]
    %v188 = vld [vmem:[#allocation5 + $0x10c] sm:$0xf]
    %v189 = vld [vmem:[#allocation5 + $0x110] sm:$0xf]
    %v190 = vld [vmem:[#allocation5 + $0x114] sm:$0xf]
    %v191 = vld [vmem:[#allocation5 + $0x118] sm:$0xf]
    %v192 = vld [vmem:[#allocation5 + $0x11c] sm:$0xf]
    %v193 = vld [vmem:[#allocation5 + $0x120] sm:$0xf]
    %v194 = vld [vmem:[#allocation5 + $0x124] sm:$0xf]
    %v195 = vld [vmem:[#allocation5 + $0x128] sm:$0xf]
    %v196 = vld [vmem:[#allocation5 + $0x12c] sm:$0xf]
    %v197 = vld [vmem:[#allocation5 + $0x130] sm:$0xf]
    %v198 = vld [vmem:[#allocation5 + $0x134] sm:$0xf]
    %v199 = vld [vmem:[#allocation5 + $0x138] sm:$0xf]
    %v200 = vld [vmem:[#allocation5 + $0x13c] sm:$0xf]
    %v201 = vld [vmem:[#allocation5 + $0x140] sm:$0xf]
    %v202 = vld [vmem:[#allocation5 + $0x144] sm:$0xf]
    %v203 = vld [vmem:[#allocation5 + $0x148] sm:$0xf]
    %v204 = vld [vmem:[#allocation5 + $0x14c] sm:$0xf]
    %v205 = vld [vmem:[#allocation5 + $0x150] sm:$0xf]
    %v206 = vld [vmem:[#allocation5 + $0x154] sm:$0xf]
    %v207 = vld [vmem:[#allocation5 + $0x158] sm:$0xf]
    %v208 = vld [vmem:[#allocation5 + $0x15c] sm:$0xf]
    %v209 = vld [vmem:[#allocation5 + $0x160] sm:$0xf]
    %v210 = vld [vmem:[#allocation5 + $0x164] sm:$0xf]
    %v211 = vld [vmem:[#allocation5 + $0x168] sm:$0xf]
    %v212 = vld [vmem:[#allocation5 + $0x16c] sm:$0xf]
    %v213 = vld [vmem:[#allocation5 + $0x170] sm:$0xf]
    %v214 = vld [vmem:[#allocation5 + $0x174] sm:$0xf]
    %v215 = vld [vmem:[#allocation5 + $0x178] sm:$0xf]
    %v216 = vld [vmem:[#allocation5 + $0x17c] sm:$0xf]
    %v217 = vld [vmem:[#allocation5 + $0x180] sm:$0xf]
    %v218 = vld [vmem:[#allocation5 + $0x184] sm:$0xf]
    %v219 = vld [vmem:[#allocation5 + $0x188] sm:$0xf]
    %v220 = vld [vmem:[#allocation5 + $0x18c] sm:$0xf]
    %v221 = vld [vmem:[#allocation5 + $0x190] sm:$0xf]
    %v222 = vld [vmem:[#allocation5 + $0x194] sm:$0xf]
    %v223 = vld [vmem:[#allocation5 + $0x198] sm:$0xf]
    %v224 = vld [vmem:[#allocation5 + $0x19c] sm:$0xf]
    %v225 = vld [vmem:[#allocation5 + $0x1a0] sm:$0xf]
    %v226 = vld [vmem:[#allocation5 + $0x1a4] sm:$0xf]
    %v227 = vld [vmem:[#allocation5 + $0x1a8] sm:$0xf]
    %v228 = vld [vmem:[#allocation5 + $0x1ac] sm:$0xf]
    %v229 = vld [vmem:[#allocation5 + $0x1b0] sm:$0xf]
    %v230 = vld [vmem:[#allocation5 + $0x1b4] sm:$0xf]
    %v231 = vld [vmem:[#allocation5 + $0x1b8] sm:$0xf]
    %v232 = vld [vmem:[#allocation5 + $0x1bc] sm:$0xf]
    %v233 = vld [vmem:[#allocation5 + $0x1c0] sm:$0xf]
    %v234 = vld [vmem:[#allocation5 + $0x1c4] sm:$0xf]
    %v235 = vld [vmem:[#allocation5 + $0x1c8] sm:$0xf]
    %v236 = vld [vmem:[#allocation5 + $0x1cc] sm:$0xf]
    %v237 = vld [vmem:[#allocation5 + $0x1d0] sm:$0xf]
    %v238 = vld [vmem:[#allocation5 + $0x1d4] sm:$0xf]
    %v239 = vld [vmem:[#allocation5 + $0x1d8] sm:$0xf]
    %v240 = vld [vmem:[#allocation5 + $0x1dc] sm:$0xf]
    %v241 = vld [vmem:[#allocation5 + $0x1e0] sm:$0xf]
    %v242 = vld [vmem:[#allocation5 + $0x1e4] sm:$0xf]
    %v243 = vld [vmem:[#allocation5 + $0x1e8] sm:$0xf]
    %v244 = vld [vmem:[#allocation5 + $0x1ec] sm:$0xf]
    %v245 = vld [vmem:[#allocation5 + $0x1f0] sm:$0xf]
    %v246 = vld [vmem:[#allocation5 + $0x1f4] sm:$0xf]
    %v247 = vld [vmem:[#allocation5 + $0x1f8] sm:$0xf]
    %v248 = vld [vmem:[#allocation5 + $0x1fc] sm:$0xf]
    %v249 = vld [vmem:[#allocation5 + $0x200] sm:$0xf]
    %v250 = vld [vmem:[#allocation5 + $0x204] sm:$0xf]
    %v251 = vld [vmem:[#allocation5 + $0x208] sm:$0xf]
    %v252 = vld [vmem:[#allocation5 + $0x20c] sm:$0xf]
    %v253 = vld [vmem:[#allocation5 + $0x210] sm:$0xf]
    %v254 = vld [vmem:[#allocation5 + $0x214] sm:$0xf]
    %v255 = vld [vmem:[#allocation5 + $0x218] sm:$0xf]
    %v256 = vld [vmem:[#allocation5 + $0x21c] sm:$0xf]
    %v257 = vld [vmem:[#allocation5 + $0x220] sm:$0xf]
    %v258 = vld [vmem:[#allocation5 + $0x224] sm:$0xf]
    %v259 = vld [vmem:[#allocation5 + $0x228] sm:$0xf]
    %v260 = vld [vmem:[#allocation5 + $0x22c] sm:$0xf]
    %v261 = vld [vmem:[#allocation5 + $0x230] sm:$0xf]
    %v262 = vld [vmem:[#allocation5 + $0x234] sm:$0xf]
    %v263 = vld [vmem:[#allocation5 + $0x238] sm:$0xf]
    %v264 = vld [vmem:[#allocation5 + $0x23c] sm:$0xf]
    %v265 = vld [vmem:[#allocation5 + $0x240] sm:$0xf]
    %v266 = vld [vmem:[#allocation5 + $0x244] sm:$0xf]
    %v267 = vld [vmem:[#allocation5 + $0x248] sm:$0xf]
    %v268 = vld [vmem:[#allocation5 + $0x24c] sm:$0xf]
    %v269 = vld [vmem:[#allocation5 + $0x250] sm:$0xf]
    %v270 = vld [vmem:[#allocation5 + $0x254] sm:$0xf]
    %v271 = vld [vmem:[#allocation5 + $0x258] sm:$0xf]
    %v272 = vld [vmem:[#allocation5 + $0x25c] sm:$0xf]
    %v273 = vld [vmem:[#allocation5 + $0x260] sm:$0xf]
    %v274 = vld [vmem:[#allocation5 + $0x264] sm:$0xf]
    %v275 = vld [vmem:[#allocation5 + $0x268] sm:$0xf]
    %v276 = vld [vmem:[#allocation5 + $0x26c] sm:$0xf]
    %v277 = vld [vmem:[#allocation5 + $0x270] sm:$0xf]
    %v278 = vld [vmem:[#allocation5 + $0x274] sm:$0xf]
    %v279 = vld [vmem:[#allocation5 + $0x278] sm:$0xf]
    %v280 = vld [vmem:[#allocation5 + $0x27c] sm:$0xf]
    %v281 = vld [vmem:[#allocation5 + $0x280] sm:$0xf]
    %v282 = vld [vmem:[#allocation5 + $0x284] sm:$0xf]
    %v283 = vld [vmem:[#allocation5 + $0x288] sm:$0xf]
    %v284 = vld [vmem:[#allocation5 + $0x28c] sm:$0xf]
    %v285 = vld [vmem:[#allocation5 + $0x290] sm:$0xf]
    %v286 = vld [vmem:[#allocation5 + $0x294] sm:$0xf]
    %v287 = vld [vmem:[#allocation5 + $0x298] sm:$0xf]
    %v288 = vld [vmem:[#allocation5 + $0x29c] sm:$0xf]
    %v289 = vld [vmem:[#allocation5 + $0x2a0] sm:$0xf]
    %v290 = vld [vmem:[#allocation5 + $0x2a4] sm:$0xf]
    %v291 = vld [vmem:[#allocation5 + $0x2a8] sm:$0xf]
    %v292 = vld [vmem:[#allocation5 + $0x2ac] sm:$0xf]
    %v293 = vld [vmem:[#allocation5 + $0x2b0] sm:$0xf]
    %v294 = vld [vmem:[#allocation5 + $0x2b4] sm:$0xf]
    %v295 = vld [vmem:[#allocation5 + $0x2b8] sm:$0xf]
    %v296 = vld [vmem:[#allocation5 + $0x2bc] sm:$0xf]
    %v297 = vld [vmem:[#allocation5 + $0x2c0] sm:$0xf]
    %v298 = vld [vmem:[#allocation5 + $0x2c4] sm:$0xf]
    %v299 = vld [vmem:[#allocation5 + $0x2c8] sm:$0xf]
    %v300 = vld [vmem:[#allocation5 + $0x2cc] sm:$0xf]
    %v301 = vld [vmem:[#allocation5 + $0x2d0] sm:$0xf]
    %v302 = vld [vmem:[#allocation5 + $0x2d4] sm:$0xf]
    %v303 = vld [vmem:[#allocation5 + $0x2d8] sm:$0xf]
    %v304 = vld [vmem:[#allocation5 + $0x2dc] sm:$0xf]
    %v305 = vld [vmem:[#allocation5 + $0x2e0] sm:$0xf]
    %v306 = vld [vmem:[#allocation5 + $0x2e4] sm:$0xf]
    %v307 = vld [vmem:[#allocation5 + $0x2e8] sm:$0xf]
    %v308 = vld [vmem:[#allocation5 + $0x2ec] sm:$0xf]
    %v309 = vld [vmem:[#allocation5 + $0x2f0] sm:$0xf]
    %v310 = vld [vmem:[#allocation5 + $0x2f4] sm:$0xf]
    %v311 = vld [vmem:[#allocation5 + $0x2f8] sm:$0xf]
    %v312 = vld [vmem:[#allocation5 + $0x2fc] sm:$0xf]
    %v313 = vld [vmem:[#allocation5 + $0x300] sm:$0xf]
    %v314 = vld [vmem:[#allocation5 + $0x304] sm:$0xf]
    %v315 = vld [vmem:[#allocation5 + $0x308] sm:$0xf]
    %v316 = vld [vmem:[#allocation5 + $0x30c] sm:$0xf]
    %v317 = vld [vmem:[#allocation5 + $0x310] sm:$0xf]
    %v318 = vld [vmem:[#allocation5 + $0x314] sm:$0xf]
    %v319 = vld [vmem:[#allocation5 + $0x318] sm:$0xf]
    %v320 = vld [vmem:[#allocation5 + $0x31c] sm:$0xf]
    %v321 = vld [vmem:[#allocation5 + $0x320] sm:$0xf]
    %v322 = vld [vmem:[#allocation5 + $0x324] sm:$0xf]
    %v323 = vld [vmem:[#allocation5 + $0x328] sm:$0xf]
    %v324 = vld [vmem:[#allocation5 + $0x32c] sm:$0xf]
    %v325 = vld [vmem:[#allocation5 + $0x330] sm:$0xf]
    %v326 = vld [vmem:[#allocation5 + $0x334] sm:$0xf]
    %v327 = vld [vmem:[#allocation5 + $0x338] sm:$0xf]
    %v328 = vld [vmem:[#allocation5 + $0x33c] sm:$0xf]
    %v329 = vld [vmem:[#allocation5 + $0x340] sm:$0xf]
    %v330 = vld [vmem:[#allocation5 + $0x344] sm:$0xf]
    %v331 = vld [vmem:[#allocation5 + $0x348] sm:$0xf]
    %v332 = vld [vmem:[#allocation5 + $0x34c] sm:$0xf]
    %v333 = vld [vmem:[#allocation5 + $0x350] sm:$0xf]
    %v334 = vld [vmem:[#allocation5 + $0x354] sm:$0xf]
    %v335 = vld [vmem:[#allocation5 + $0x358] sm:$0xf]
    %v336 = vld [vmem:[#allocation5 + $0x35c] sm:$0xf]
    %v337 = vld [vmem:[#allocation5 + $0x360] sm:$0xf]
    %v338 = vld [vmem:[#allocation5 + $0x364] sm:$0xf]
    %v339 = vld [vmem:[#allocation5 + $0x368] sm:$0xf]
    %v340 = vld [vmem:[#allocation5 + $0x36c] sm:$0xf]
    %v341 = vld [vmem:[#allocation5 + $0x370] sm:$0xf]
    %v342 = vld [vmem:[#allocation5 + $0x374] sm:$0xf]
    %v343 = vld [vmem:[#allocation5 + $0x378] sm:$0xf]
    %v344 = vld [vmem:[#allocation5 + $0x37c] sm:$0xf]
    %v345 = vld [vmem:[#allocation5 + $0x380] sm:$0xf]
    %v346 = vld [vmem:[#allocation5 + $0x384] sm:$0xf]
    %v347 = vld [vmem:[#allocation5 + $0x388] sm:$0xf]
    %v348 = vld [vmem:[#allocation5 + $0x38c] sm:$0xf]
    %v349 = vld [vmem:[#allocation5 + $0x390] sm:$0xf]
    %v350 = vld [vmem:[#allocation5 + $0x394] sm:$0xf]
    %v351 = vld [vmem:[#allocation5 + $0x398] sm:$0xf]
    %v352 = vld [vmem:[#allocation5 + $0x39c] sm:$0xf]
    %v353 = vld [vmem:[#allocation5 + $0x3a0] sm:$0xf]
    %v354 = vld [vmem:[#allocation5 + $0x3a4] sm:$0xf]
    %v355 = vld [vmem:[#allocation5 + $0x3a8] sm:$0xf]
    %v356 = vld [vmem:[#allocation5 + $0x3ac] sm:$0xf]
    %v357 = vld [vmem:[#allocation5 + $0x3b0] sm:$0xf]
    %v358 = vld [vmem:[#allocation5 + $0x3b4] sm:$0xf]
    %v359 = vld [vmem:[#allocation5 + $0x3b8] sm:$0xf]
    %v360 = vld [vmem:[#allocation5 + $0x3bc] sm:$0xf]
    %v361 = vld [vmem:[#allocation5 + $0x3c0] sm:$0xf]
    %v362 = vld [vmem:[#allocation5 + $0x3c4] sm:$0xf]
    %v363 = vld [vmem:[#allocation5 + $0x3c8] sm:$0xf]
    %v364 = vld [vmem:[#allocation5 + $0x3cc] sm:$0xf]
    %v365 = vld [vmem:[#allocation5 + $0x3d0] sm:$0xf]
    %v366 = vld [vmem:[#allocation5 + $0x3d4] sm:$0xf]
    %v367 = vld [vmem:[#allocation5 + $0x3d8] sm:$0xf]
    %v368 = vld [vmem:[#allocation5 + $0x3dc] sm:$0xf]
    %v369 = vld [vmem:[%s2] sm:$0x1]
    %v371 = vperm.slane %v369, 0
    %v621 = vunpack.c.l.b16 %v121
    %v622 = vunpack.c.l.b16 %v122
    %v623 = vunpack.c.l.b16 %v123
    %v624 = vunpack.c.l.b16 %v124
    %v625 = vunpack.c.l.b16 %v125
    %v626 = vunpack.c.l.b16 %v126
    %v627 = vunpack.c.l.b16 %v127
    %v628 = vunpack.c.l.b16 %v128
    %v629 = vunpack.c.l.b16 %v129
    %v630 = vunpack.c.l.b16 %v130
    %v631 = vunpack.c.l.b16 %v131
    %v632 = vunpack.c.l.b16 %v132
    %v633 = vunpack.c.l.b16 %v133
    %v634 = vunpack.c.l.b16 %v134
    %v635 = vunpack.c.l.b16 %v135
    %v636 = vunpack.c.l.b16 %v136
    %v637 = vunpack.c.l.b16 %v137
    %v638 = vunpack.c.l.b16 %v138
    %v639 = vunpack.c.l.b16 %v139
    %v640 = vunpack.c.l.b16 %v140
    %v641 = vunpack.c.l.b16 %v141
    %v642 = vunpack.c.l.b16 %v142
    %v643 = vunpack.c.l.b16 %v143
    %v644 = vunpack.c.l.b16 %v144
    %v645 = vunpack.c.l.b16 %v145
    %v646 = vunpack.c.l.b16 %v146
    %v647 = vunpack.c.l.b16 %v147
    %v648 = vunpack.c.l.b16 %v148
    %v649 = vunpack.c.l.b16 %v149
    %v650 = vunpack.c.l.b16 %v150
    %v651 = vunpack.c.l.b16 %v151
    %v652 = vunpack.c.l.b16 %v152
    %v653 = vunpack.c.l.b16 %v153
    %v654 = vunpack.c.l.b16 %v154
    %v655 = vunpack.c.l.b16 %v155
    %v656 = vunpack.c.l.b16 %v156
    %v657 = vunpack.c.l.b16 %v157
    %v658 = vunpack.c.l.b16 %v158
    %v659 = vunpack.c.l.b16 %v159
    %v660 = vunpack.c.l.b16 %v160
    %v661 = vunpack.c.l.b16 %v161
    %v662 = vunpack.c.l.b16 %v162
    %v663 = vunpack.c.l.b16 %v163
    %v664 = vunpack.c.l.b16 %v164
    %v665 = vunpack.c.l.b16 %v165
    %v666 = vunpack.c.l.b16 %v166
    %v667 = vunpack.c.l.b16 %v167
    %v668 = vunpack.c.l.b16 %v168
    %v669 = vunpack.c.l.b16 %v169
    %v670 = vunpack.c.l.b16 %v170
    %v671 = vunpack.c.l.b16 %v171
    %v672 = vunpack.c.l.b16 %v172
    %v673 = vunpack.c.l.b16 %v173
    %v674 = vunpack.c.l.b16 %v174
    %v675 = vunpack.c.l.b16 %v175
    %v676 = vunpack.c.l.b16 %v176
    %v677 = vunpack.c.l.b16 %v177
    %v678 = vunpack.c.l.b16 %v178
    %v679 = vunpack.c.l.b16 %v179
    %v680 = vunpack.c.l.b16 %v180
    %v681 = vunpack.c.l.b16 %v181
    %v682 = vunpack.c.l.b16 %v182
    %v683 = vunpack.c.l.b16 %v183
    %v684 = vunpack.c.l.b16 %v184
    %v685 = vunpack.c.l.b16 %v185
    %v686 = vunpack.c.l.b16 %v186
    %v687 = vunpack.c.l.b16 %v187
    %v688 = vunpack.c.l.b16 %v188
    %v689 = vunpack.c.l.b16 %v189
    %v690 = vunpack.c.l.b16 %v190
    %v691 = vunpack.c.l.b16 %v191
    %v692 = vunpack.c.l.b16 %v192
    %v693 = vunpack.c.l.b16 %v193
    %v694 = vunpack.c.l.b16 %v194
    %v695 = vunpack.c.l.b16 %v195
    %v696 = vunpack.c.l.b16 %v196
    %v697 = vunpack.c.l.b16 %v197
    %v698 = vunpack.c.l.b16 %v198
    %v699 = vunpack.c.l.b16 %v199
    %v700 = vunpack.c.l.b16 %v200
    %v701 = vunpack.c.l.b16 %v201
    %v702 = vunpack.c.l.b16 %v202
    %v703 = vunpack.c.l.b16 %v203
    %v704 = vunpack.c.l.b16 %v204
    %v705 = vunpack.c.l.b16 %v205
    %v706 = vunpack.c.l.b16 %v206
    %v707 = vunpack.c.l.b16 %v207
    %v708 = vunpack.c.l.b16 %v208
    %v709 = vunpack.c.l.b16 %v209
    %v710 = vunpack.c.l.b16 %v210
    %v711 = vunpack.c.l.b16 %v211
    %v712 = vunpack.c.l.b16 %v212
    %v713 = vunpack.c.l.b16 %v213
    %v714 = vunpack.c.l.b16 %v214
    %v715 = vunpack.c.l.b16 %v215
    %v716 = vunpack.c.l.b16 %v216
    %v717 = vunpack.c.l.b16 %v217
    %v718 = vunpack.c.l.b16 %v218
    %v719 = vunpack.c.l.b16 %v219
    %v720 = vunpack.c.l.b16 %v220
    %v721 = vunpack.c.l.b16 %v221
    %v722 = vunpack.c.l.b16 %v222
    %v723 = vunpack.c.l.b16 %v223
    %v724 = vunpack.c.l.b16 %v224
    %v725 = vunpack.c.l.b16 %v225
    %v726 = vunpack.c.l.b16 %v226
    %v727 = vunpack.c.l.b16 %v227
    %v728 = vunpack.c.l.b16 %v228
    %v729 = vunpack.c.l.b16 %v229
    %v730 = vunpack.c.l.b16 %v230
    %v731 = vunpack.c.l.b16 %v231
    %v732 = vunpack.c.l.b16 %v232
    %v733 = vunpack.c.l.b16 %v233
    %v734 = vunpack.c.l.b16 %v234
    %v735 = vunpack.c.l.b16 %v235
    %v736 = vunpack.c.l.b16 %v236
    %v737 = vunpack.c.l.b16 %v237
    %v738 = vunpack.c.l.b16 %v238
    %v739 = vunpack.c.l.b16 %v239
    %v740 = vunpack.c.l.b16 %v240
    %v741 = vunpack.c.l.b16 %v241
    %v742 = vunpack.c.l.b16 %v242
    %v743 = vunpack.c.l.b16 %v243
    %v744 = vunpack.c.l.b16 %v244
    %v745 = vunpack.c.l.b16 %v245
    %v746 = vunpack.c.l.b16 %v246
    %v747 = vunpack.c.l.b16 %v247
    %v748 = vunpack.c.l.b16 %v248
    %v749 = vunpack.c.l.b16 %v249
    %v750 = vunpack.c.l.b16 %v250
    %v751 = vunpack.c.l.b16 %v251
    %v752 = vunpack.c.l.b16 %v252
    %v753 = vunpack.c.l.b16 %v253
    %v754 = vunpack.c.l.b16 %v254
    %v755 = vunpack.c.l.b16 %v255
    %v756 = vunpack.c.l.b16 %v256
    %v757 = vunpack.c.l.b16 %v257
    %v758 = vunpack.c.l.b16 %v258
    %v759 = vunpack.c.l.b16 %v259
    %v760 = vunpack.c.l.b16 %v260
    %v761 = vunpack.c.l.b16 %v261
    %v762 = vunpack.c.l.b16 %v262
    %v763 = vunpack.c.l.b16 %v263
    %v764 = vunpack.c.l.b16 %v264
    %v765 = vunpack.c.l.b16 %v265
    %v766 = vunpack.c.l.b16 %v266
    %v767 = vunpack.c.l.b16 %v267
    %v768 = vunpack.c.l.b16 %v268
    %v769 = vunpack.c.l.b16 %v269
    %v770 = vunpack.c.l.b16 %v270
    %v771 = vunpack.c.l.b16 %v271
    %v772 = vunpack.c.l.b16 %v272
    %v773 = vunpack.c.l.b16 %v273
    %v774 = vunpack.c.l.b16 %v274
    %v775 = vunpack.c.l.b16 %v275
    %v776 = vunpack.c.l.b16 %v276
    %v777 = vunpack.c.l.b16 %v277
    %v778 = vunpack.c.l.b16 %v278
    %v779 = vunpack.c.l.b16 %v279
    %v780 = vunpack.c.l.b16 %v280
    %v781 = vunpack.c.l.b16 %v281
    %v782 = vunpack.c.l.b16 %v282
    %v783 = vunpack.c.l.b16 %v283
    %v784 = vunpack.c.l.b16 %v284
    %v785 = vunpack.c.l.b16 %v285
    %v786 = vunpack.c.l.b16 %v286
    %v787 = vunpack.c.l.b16 %v287
    %v788 = vunpack.c.l.b16 %v288
    %v789 = vunpack.c.l.b16 %v289
    %v790 = vunpack.c.l.b16 %v290
    %v791 = vunpack.c.l.b16 %v291
    %v792 = vunpack.c.l.b16 %v292
    %v793 = vunpack.c.l.b16 %v293
    %v794 = vunpack.c.l.b16 %v294
    %v795 = vunpack.c.l.b16 %v295
    %v796 = vunpack.c.l.b16 %v296
    %v797 = vunpack.c.l.b16 %v297
    %v798 = vunpack.c.l.b16 %v298
    %v799 = vunpack.c.l.b16 %v299
    %v800 = vunpack.c.l.b16 %v300
    %v801 = vunpack.c.l.b16 %v301
    %v802 = vunpack.c.l.b16 %v302
    %v803 = vunpack.c.l.b16 %v303
    %v804 = vunpack.c.l.b16 %v304
    %v805 = vunpack.c.l.b16 %v305
    %v806 = vunpack.c.l.b16 %v306
    %v807 = vunpack.c.l.b16 %v307
    %v808 = vunpack.c.l.b16 %v308
    %v809 = vunpack.c.l.b16 %v309
    %v810 = vunpack.c.l.b16 %v310
    %v811 = vunpack.c.l.b16 %v311
    %v812 = vunpack.c.l.b16 %v312
    %v813 = vunpack.c.l.b16 %v313
    %v814 = vunpack.c.l.b16 %v314
    %v815 = vunpack.c.l.b16 %v315
    %v816 = vunpack.c.l.b16 %v316
    %v817 = vunpack.c.l.b16 %v317
    %v818 = vunpack.c.l.b16 %v318
    %v819 = vunpack.c.l.b16 %v319
    %v820 = vunpack.c.l.b16 %v320
    %v821 = vunpack.c.l.b16 %v321
    %v822 = vunpack.c.l.b16 %v322
    %v823 = vunpack.c.l.b16 %v323
    %v824 = vunpack.c.l.b16 %v324
    %v825 = vunpack.c.l.b16 %v325
    %v826 = vunpack.c.l.b16 %v326
    %v827 = vunpack.c.l.b16 %v327
    %v828 = vunpack.c.l.b16 %v328
    %v829 = vunpack.c.l.b16 %v329
    %v830 = vunpack.c.l.b16 %v330
    %v831 = vunpack.c.l.b16 %v331
    %v832 = vunpack.c.l.b16 %v332
    %v833 = vunpack.c.l.b16 %v333
    %v834 = vunpack.c.l.b16 %v334
    %v835 = vunpack.c.l.b16 %v335
    %v836 = vunpack.c.l.b16 %v336
    %v837 = vunpack.c.l.b16 %v337
    %v838 = vunpack.c.l.b16 %v338
    %v839 = vunpack.c.l.b16 %v339
    %v840 = vunpack.c.l.b16 %v340
    %v841 = vunpack.c.l.b16 %v341
    %v842 = vunpack.c.l.b16 %v342
    %v843 = vunpack.c.l.b16 %v343
    %v844 = vunpack.c.l.b16 %v344
    %v845 = vunpack.c.l.b16 %v345
    %v846 = vunpack.c.l.b16 %v346
    %v847 = vunpack.c.l.b16 %v347
    %v848 = vunpack.c.l.b16 %v348
    %v849 = vunpack.c.l.b16 %v349
    %v850 = vunpack.c.l.b16 %v350
    %v851 = vunpack.c.l.b16 %v351
    %v852 = vunpack.c.l.b16 %v352
    %v853 = vunpack.c.l.b16 %v353
    %v854 = vunpack.c.l.b16 %v354
    %v855 = vunpack.c.l.b16 %v355
    %v856 = vunpack.c.l.b16 %v356
    %v857 = vunpack.c.l.b16 %v357
    %v858 = vunpack.c.l.b16 %v358
    %v859 = vunpack.c.l.b16 %v359
    %v860 = vunpack.c.l.b16 %v360
    %v861 = vunpack.c.l.b16 %v361
    %v862 = vunpack.c.l.b16 %v362
    %v863 = vunpack.c.l.b16 %v363
    %v864 = vunpack.c.l.b16 %v364
    %v865 = vunpack.c.l.b16 %v365
    %v866 = vunpack.c.l.b16 %v366
    %v867 = vunpack.c.l.b16 %v367
    %v868 = vunpack.c.l.b16 %v368
    %v869 = vpack.c.b16 %v622, %v621
    %v870 = vpack.c.b16 %v624, %v623
    %v871 = vpack.c.b16 %v626, %v625
    %v872 = vpack.c.b16 %v628, %v627
    %v873 = vpack.c.b16 %v630, %v629
    %v874 = vpack.c.b16 %v632, %v631
    %v875 = vpack.c.b16 %v634, %v633
    %v876 = vpack.c.b16 %v636, %v635
    %v877 = vpack.c.b16 %v638, %v637
    %v878 = vpack.c.b16 %v640, %v639
    %v879 = vpack.c.b16 %v642, %v641
    %v880 = vpack.c.b16 %v644, %v643
    %v881 = vpack.c.b16 %v646, %v645
    %v882 = vpack.c.b16 %v648, %v647
    %v883 = vpack.c.b16 %v650, %v649
    %v884 = vpack.c.b16 %v652, %v651
    %v885 = vpack.c.b16 %v654, %v653
    %v886 = vpack.c.b16 %v656, %v655
    %v887 = vpack.c.b16 %v658, %v657
    %v888 = vpack.c.b16 %v660, %v659
    %v889 = vpack.c.b16 %v662, %v661
    %v890 = vpack.c.b16 %v664, %v663
    %v891 = vpack.c.b16 %v666, %v665
    %v892 = vpack.c.b16 %v668, %v667
    %v893 = vpack.c.b16 %v670, %v669
    %v894 = vpack.c.b16 %v672, %v671
    %v895 = vpack.c.b16 %v674, %v673
    %v896 = vpack.c.b16 %v676, %v675
    %v897 = vpack.c.b16 %v678, %v677
    %v898 = vpack.c.b16 %v680, %v679
    %v899 = vpack.c.b16 %v682, %v681
    %v900 = vpack.c.b16 %v684, %v683
    %v901 = vpack.c.b16 %v686, %v685
    %v902 = vpack.c.b16 %v688, %v687
    %v903 = vpack.c.b16 %v690, %v689
    %v904 = vpack.c.b16 %v692, %v691
    %v905 = vpack.c.b16 %v694, %v693
    %v906 = vpack.c.b16 %v696, %v695
    %v907 = vpack.c.b16 %v698, %v697
    %v908 = vpack.c.b16 %v700, %v699
    %v909 = vpack.c.b16 %v702, %v701
    %v910 = vpack.c.b16 %v704, %v703
    %v911 = vpack.c.b16 %v706, %v705
    %v912 = vpack.c.b16 %v708, %v707
    %v913 = vpack.c.b16 %v710, %v709
    %v914 = vpack.c.b16 %v712, %v711
    %v915 = vpack.c.b16 %v714, %v713
    %v916 = vpack.c.b16 %v716, %v715
    %v917 = vpack.c.b16 %v718, %v717
    %v918 = vpack.c.b16 %v720, %v719
    %v919 = vpack.c.b16 %v722, %v721
    %v920 = vpack.c.b16 %v724, %v723
    %v921 = vpack.c.b16 %v726, %v725
    %v922 = vpack.c.b16 %v728, %v727
    %v923 = vpack.c.b16 %v730, %v729
    %v924 = vpack.c.b16 %v732, %v731
    %v925 = vpack.c.b16 %v734, %v733
    %v926 = vpack.c.b16 %v736, %v735
    %v927 = vpack.c.b16 %v738, %v737
    %v928 = vpack.c.b16 %v740, %v739
    %v929 = vpack.c.b16 %v742, %v741
    %v930 = vpack.c.b16 %v744, %v743
    %v931 = vpack.c.b16 %v746, %v745
    %v932 = vpack.c.b16 %v748, %v747
    %v933 = vpack.c.b16 %v750, %v749
    %v934 = vpack.c.b16 %v752, %v751
    %v935 = vpack.c.b16 %v754, %v753
    %v936 = vpack.c.b16 %v756, %v755
    %v937 = vpack.c.b16 %v758, %v757
    %v938 = vpack.c.b16 %v760, %v759
    %v939 = vpack.c.b16 %v762, %v761
    %v940 = vpack.c.b16 %v764, %v763
    %v941 = vpack.c.b16 %v766, %v765
    %v942 = vpack.c.b16 %v768, %v767
    %v943 = vpack.c.b16 %v770, %v769
    %v944 = vpack.c.b16 %v772, %v771
    %v945 = vpack.c.b16 %v774, %v773
    %v946 = vpack.c.b16 %v776, %v775
    %v947 = vpack.c.b16 %v778, %v777
    %v948 = vpack.c.b16 %v780, %v779
    %v949 = vpack.c.b16 %v782, %v781
    %v950 = vpack.c.b16 %v784, %v783
    %v951 = vpack.c.b16 %v786, %v785
    %v952 = vpack.c.b16 %v788, %v787
    %v953 = vpack.c.b16 %v790, %v789
    %v954 = vpack.c.b16 %v792, %v791
    %v955 = vpack.c.b16 %v794, %v793
    %v956 = vpack.c.b16 %v796, %v795
    %v957 = vpack.c.b16 %v798, %v797
    %v958 = vpack.c.b16 %v800, %v799
    %v959 = vpack.c.b16 %v802, %v801
    %v960 = vpack.c.b16 %v804, %v803
    %v961 = vpack.c.b16 %v806, %v805
    %v962 = vpack.c.b16 %v808, %v807
    %v963 = vpack.c.b16 %v810, %v809
    %v964 = vpack.c.b16 %v812, %v811
    %v965 = vpack.c.b16 %v814, %v813
    %v966 = vpack.c.b16 %v816, %v815
    %v967 = vpack.c.b16 %v818, %v817
    %v968 = vpack.c.b16 %v820, %v819
    %v969 = vpack.c.b16 %v822, %v821
    %v970 = vpack.c.b16 %v824, %v823
    %v971 = vpack.c.b16 %v826, %v825
    %v972 = vpack.c.b16 %v828, %v827
    %v973 = vpack.c.b16 %v830, %v829
    %v974 = vpack.c.b16 %v832, %v831
    %v975 = vpack.c.b16 %v834, %v833
    %v976 = vpack.c.b16 %v836, %v835
    %v977 = vpack.c.b16 %v838, %v837
    %v978 = vpack.c.b16 %v840, %v839
    %v979 = vpack.c.b16 %v842, %v841
    %v980 = vpack.c.b16 %v844, %v843
    %v981 = vpack.c.b16 %v846, %v845
    %v982 = vpack.c.b16 %v848, %v847
    %v983 = vpack.c.b16 %v850, %v849
    %v984 = vpack.c.b16 %v852, %v851
    %v985 = vpack.c.b16 %v854, %v853
    %v986 = vpack.c.b16 %v856, %v855
    %v987 = vpack.c.b16 %v858, %v857
    %v988 = vpack.c.b16 %v860, %v859
    %v989 = vpack.c.b16 %v862, %v861
    %v990 = vpack.c.b16 %v864, %v863
    %v991 = vpack.c.b16 %v866, %v865
    %v992 = vpack.c.b16 %v868, %v867
    %vm1117 = vcmask 523264
    %v1119 = vsel %vm1117, %v120, 0
    %1121 = vmatpush.bf16.msra.mxu0 %v876
    %1122 = vmatpush.bf16.msra.mxu0 %v875
    %1123 = vmatpush.bf16.msra.mxu0 %v874
    %1124 = vmatpush.bf16.msra.mxu0 %v873
    %1125 = vmatpush.bf16.msra.mxu0 %v872
    %1126 = vmatpush.bf16.msra.mxu0 %v871
    %1127 = vmatpush.bf16.msra.mxu0 %v870
    %1128 = vmatpush.bf16.msra.mxu0 %v869
    %1129 = vmatmul.bf16.gmra.mxu0 %v105
    %v1130 = vpop.f32.mrf.mxu0
    %v1131 = vadd.f32 %v371, %v1130
    %v1132 = vpop.f32.mrf.mxu0
    %1133 = vdwg.mxu0
    %1134 = vmatpush.bf16.msra.mxu0 %v884
    %1135 = vmatpush.bf16.msra.mxu0 %v883
    %1136 = vmatpush.bf16.msra.mxu0 %v882
    %1137 = vmatpush.bf16.msra.mxu0 %v881
    %1138 = vmatpush.bf16.msra.mxu0 %v880
    %1139 = vmatpush.bf16.msra.mxu0 %v879
    %1140 = vmatpush.bf16.msra.mxu0 %v878
    %1141 = vmatpush.bf16.msra.mxu0 %v877
    %1142 = vmatmul.bf16.gmra.mxu0 %v106
    %v1143 = vpop.f32.mrf.mxu0
    %v1144 = vadd.f32 %v1131, %v1143
    %v1145 = vpop.f32.mrf.mxu0
    %1146 = vdwg.mxu0
    %1147 = vmatpush.bf16.msra.mxu0 %v892
    %1148 = vmatpush.bf16.msra.mxu0 %v891
    %1149 = vmatpush.bf16.msra.mxu0 %v890
    %1150 = vmatpush.bf16.msra.mxu0 %v889
    %1151 = vmatpush.bf16.msra.mxu0 %v888
    %1152 = vmatpush.bf16.msra.mxu0 %v887
    %1153 = vmatpush.bf16.msra.mxu0 %v886
    %1154 = vmatpush.bf16.msra.mxu0 %v885
    %1155 = vmatmul.bf16.gmra.mxu0 %v107
    %v1156 = vpop.f32.mrf.mxu0
    %v1157 = vadd.f32 %v1144, %v1156
    %v1158 = vpop.f32.mrf.mxu0
    %1159 = vdwg.mxu0
    %1160 = vmatpush.bf16.msra.mxu0 %v900
    %1161 = vmatpush.bf16.msra.mxu0 %v899
    %1162 = vmatpush.bf16.msra.mxu0 %v898
    %1163 = vmatpush.bf16.msra.mxu0 %v897
    %1164 = vmatpush.bf16.msra.mxu0 %v896
    %1165 = vmatpush.bf16.msra.mxu0 %v895
    %1166 = vmatpush.bf16.msra.mxu0 %v894
    %1167 = vmatpush.bf16.msra.mxu0 %v893
    %1168 = vmatmul.bf16.gmra.mxu0 %v108
    %v1169 = vpop.f32.mrf.mxu0
    %v1170 = vadd.f32 %v1157, %v1169
    %v1171 = vpop.f32.mrf.mxu0
    %1172 = vdwg.mxu0
    %1173 = vmatpush.bf16.msra.mxu0 %v908
    %1174 = vmatpush.bf16.msra.mxu0 %v907
    %1175 = vmatpush.bf16.msra.mxu0 %v906
    %1176 = vmatpush.bf16.msra.mxu0 %v905
    %1177 = vmatpush.bf16.msra.mxu0 %v904
    %1178 = vmatpush.bf16.msra.mxu0 %v903
    %1179 = vmatpush.bf16.msra.mxu0 %v902
    %1180 = vmatpush.bf16.msra.mxu0 %v901
    %1181 = vmatmul.bf16.gmra.mxu0 %v109
    %v1182 = vpop.f32.mrf.mxu0
    %v1183 = vadd.f32 %v1170, %v1182
    %v1184 = vpop.f32.mrf.mxu0
    %1185 = vdwg.mxu0
    %1186 = vmatpush.bf16.msra.mxu0 %v916
    %1187 = vmatpush.bf16.msra.mxu0 %v915
    %1188 = vmatpush.bf16.msra.mxu0 %v914
    %1189 = vmatpush.bf16.msra.mxu0 %v913
    %1190 = vmatpush.bf16.msra.mxu0 %v912
    %1191 = vmatpush.bf16.msra.mxu0 %v911
    %1192 = vmatpush.bf16.msra.mxu0 %v910
    %1193 = vmatpush.bf16.msra.mxu0 %v909
    %1194 = vmatmul.bf16.gmra.mxu0 %v110
    %v1195 = vpop.f32.mrf.mxu0
    %v1196 = vadd.f32 %v1183, %v1195
    %v1197 = vpop.f32.mrf.mxu0
    %1198 = vdwg.mxu0
    %1199 = vmatpush.bf16.msra.mxu0 %v924
    %1200 = vmatpush.bf16.msra.mxu0 %v923
    %1201 = vmatpush.bf16.msra.mxu0 %v922
    %1202 = vmatpush.bf16.msra.mxu0 %v921
    %1203 = vmatpush.bf16.msra.mxu0 %v920
    %1204 = vmatpush.bf16.msra.mxu0 %v919
    %1205 = vmatpush.bf16.msra.mxu0 %v918
    %1206 = vmatpush.bf16.msra.mxu0 %v917
    %1207 = vmatmul.bf16.gmra.mxu0 %v111
    %v1208 = vpop.f32.mrf.mxu0
    %v1209 = vadd.f32 %v1196, %v1208
    %v1210 = vpop.f32.mrf.mxu0
    %1211 = vdwg.mxu0
    %1212 = vmatpush.bf16.msra.mxu0 %v932
    %1213 = vmatpush.bf16.msra.mxu0 %v931
    %1214 = vmatpush.bf16.msra.mxu0 %v930
    %1215 = vmatpush.bf16.msra.mxu0 %v929
    %1216 = vmatpush.bf16.msra.mxu0 %v928
    %1217 = vmatpush.bf16.msra.mxu0 %v927
    %1218 = vmatpush.bf16.msra.mxu0 %v926
    %1219 = vmatpush.bf16.msra.mxu0 %v925
    %1220 = vmatmul.bf16.gmra.mxu0 %v112
    %v1221 = vpop.f32.mrf.mxu0
    %v1222 = vadd.f32 %v1209, %v1221
    %v1223 = vpop.f32.mrf.mxu0
    %1224 = vdwg.mxu0
    %1225 = vmatpush.bf16.msra.mxu0 %v940
    %1226 = vmatpush.bf16.msra.mxu0 %v939
    %1227 = vmatpush.bf16.msra.mxu0 %v938
    %1228 = vmatpush.bf16.msra.mxu0 %v937
    %1229 = vmatpush.bf16.msra.mxu0 %v936
    %1230 = vmatpush.bf16.msra.mxu0 %v935
    %1231 = vmatpush.bf16.msra.mxu0 %v934
    %1232 = vmatpush.bf16.msra.mxu0 %v933
    %1233 = vmatmul.bf16.gmra.mxu0 %v113
    %v1234 = vpop.f32.mrf.mxu0
    %v1235 = vadd.f32 %v1222, %v1234
    %v1236 = vpop.f32.mrf.mxu0
    %1237 = vdwg.mxu0
    %1238 = vmatpush.bf16.msra.mxu0 %v948
    %1239 = vmatpush.bf16.msra.mxu0 %v947
    %1240 = vmatpush.bf16.msra.mxu0 %v946
    %1241 = vmatpush.bf16.msra.mxu0 %v945
    %1242 = vmatpush.bf16.msra.mxu0 %v944
    %1243 = vmatpush.bf16.msra.mxu0 %v943
    %1244 = vmatpush.bf16.msra.mxu0 %v942
    %1245 = vmatpush.bf16.msra.mxu0 %v941
    %1246 = vmatmul.bf16.gmra.mxu0 %v114
    %v1247 = vpop.f32.mrf.mxu0
    %v1248 = vadd.f32 %v1235, %v1247
    %v1249 = vpop.f32.mrf.mxu0
    %1250 = vdwg.mxu0
    %1251 = vmatpush.bf16.msra.mxu0 %v956
    %1252 = vmatpush.bf16.msra.mxu0 %v955
    %1253 = vmatpush.bf16.msra.mxu0 %v954
    %1254 = vmatpush.bf16.msra.mxu0 %v953
    %1255 = vmatpush.bf16.msra.mxu0 %v952
    %1256 = vmatpush.bf16.msra.mxu0 %v951
    %1257 = vmatpush.bf16.msra.mxu0 %v950
    %1258 = vmatpush.bf16.msra.mxu0 %v949
    %1259 = vmatmul.bf16.gmra.mxu0 %v115
    %v1260 = vpop.f32.mrf.mxu0
    %v1261 = vadd.f32 %v1248, %v1260
    %v1262 = vpop.f32.mrf.mxu0
    %1263 = vdwg.mxu0
    %1264 = vmatpush.bf16.msra.mxu0 %v964
    %1265 = vmatpush.bf16.msra.mxu0 %v963
    %1266 = vmatpush.bf16.msra.mxu0 %v962
    %1267 = vmatpush.bf16.msra.mxu0 %v961
    %1268 = vmatpush.bf16.msra.mxu0 %v960
    %1269 = vmatpush.bf16.msra.mxu0 %v959
    %1270 = vmatpush.bf16.msra.mxu0 %v958
    %1271 = vmatpush.bf16.msra.mxu0 %v957
    %1272 = vmatmul.bf16.gmra.mxu0 %v116
    %v1273 = vpop.f32.mrf.mxu0
    %v1274 = vadd.f32 %v1261, %v1273
    %v1275 = vpop.f32.mrf.mxu0
    %1276 = vdwg.mxu0
    %1277 = vmatpush.bf16.msra.mxu0 %v972
    %1278 = vmatpush.bf16.msra.mxu0 %v971
    %1279 = vmatpush.bf16.msra.mxu0 %v970
    %1280 = vmatpush.bf16.msra.mxu0 %v969
    %1281 = vmatpush.bf16.msra.mxu0 %v968
    %1282 = vmatpush.bf16.msra.mxu0 %v967
    %1283 = vmatpush.bf16.msra.mxu0 %v966
    %1284 = vmatpush.bf16.msra.mxu0 %v965
    %1285 = vmatmul.bf16.gmra.mxu0 %v117
    %v1286 = vpop.f32.mrf.mxu0
    %v1287 = vadd.f32 %v1274, %v1286
    %v1288 = vpop.f32.mrf.mxu0
    %1289 = vdwg.mxu0
    %1290 = vmatpush.bf16.msra.mxu0 %v980
    %1291 = vmatpush.bf16.msra.mxu0 %v979
    %1292 = vmatpush.bf16.msra.mxu0 %v978
    %1293 = vmatpush.bf16.msra.mxu0 %v977
    %1294 = vmatpush.bf16.msra.mxu0 %v976
    %1295 = vmatpush.bf16.msra.mxu0 %v975
    %1296 = vmatpush.bf16.msra.mxu0 %v974
    %1297 = vmatpush.bf16.msra.mxu0 %v973
    %1298 = vmatmul.bf16.gmra.mxu0 %v118
    %v1299 = vpop.f32.mrf.mxu0
    %v1300 = vadd.f32 %v1287, %v1299
    %v1301 = vpop.f32.mrf.mxu0
    %1302 = vdwg.mxu0
    %1303 = vmatpush.bf16.msra.mxu0 %v988
    %1304 = vmatpush.bf16.msra.mxu0 %v987
    %1305 = vmatpush.bf16.msra.mxu0 %v986
    %1306 = vmatpush.bf16.msra.mxu0 %v985
    %1307 = vmatpush.bf16.msra.mxu0 %v984
    %1308 = vmatpush.bf16.msra.mxu0 %v983
    %1309 = vmatpush.bf16.msra.mxu0 %v982
    %1310 = vmatpush.bf16.msra.mxu0 %v981
    %1311 = vmatmul.bf16.gmra.mxu0 %v119
    %v1312 = vpop.f32.mrf.mxu0
    %v1313 = vadd.f32 %v1300, %v1312
    %v1314 = vpop.f32.mrf.mxu0
    %1315 = vdwg.mxu0
    %1316 = vmatpush.bf16.msra.mxu0 0
    %1317 = vmatpush.bf16.msra.mxu0 0
    %1318 = vmatpush.bf16.msra.mxu0 0
    %1319 = vmatpush.bf16.msra.mxu0 0
    %1320 = vmatpush.bf16.msra.mxu0 %v992
    %1321 = vmatpush.bf16.msra.mxu0 %v991
    %1322 = vmatpush.bf16.msra.mxu0 %v990
    %1323 = vmatpush.bf16.msra.mxu0 %v989
    %1324 = vmatmul.bf16.gmra.mxu0 %v1119
    %v1325 = vpop.f32.mrf.mxu0
    %v1326 = vadd.f32 %v1313, %v1325
    %v1327 = vpop.f32.mrf.mxu0
    %1328 = vdwg.mxu0
    %vm1329 = vcmp.gt.f32.partialorder %v1326, 0.0
    %v1330 = vmul.f32 %v1326, 0.01
    %v1331 = vsel %vm1329, %v1326, %v1330
    %v1332 = vpack.c.bf16 %v1331, %v1331
    %v1333 = vld [vmem:[#allocation7] sm:$0xf]
    %v1334 = vld [vmem:[#allocation7 + $0x4] sm:$0xf]
    %v1335 = vld [vmem:[#allocation7 + $0x8] sm:$0xf]
    %v1336 = vld [vmem:[#allocation7 + $0xc] sm:$0xf]
    %v1337 = vld [vmem:[#allocation7 + $0x10] sm:$0xf]
    %v1338 = vld [vmem:[#allocation7 + $0x14] sm:$0xf]
    %v1339 = vld [vmem:[#allocation7 + $0x18] sm:$0xf]
    %v1340 = vld [vmem:[#allocation7 + $0x1c] sm:$0xf]
    %v1341 = vld [vmem:[#allocation7 + $0x20] sm:$0xf]
    %v1342 = vld [vmem:[#allocation7 + $0x24] sm:$0xf]
    %v1343 = vld [vmem:[#allocation7 + $0x28] sm:$0xf]
    %v1344 = vld [vmem:[#allocation7 + $0x2c] sm:$0xf]
    %v1345 = vld [vmem:[#allocation7 + $0x30] sm:$0xf]
    %v1346 = vld [vmem:[#allocation7 + $0x34] sm:$0xf]
    %v1347 = vld [vmem:[#allocation7 + $0x38] sm:$0xf]
    %v1348 = vld [vmem:[#allocation7 + $0x3c] sm:$0xf]
    %v1349 = vld [vmem:[%s4] sm:$0x1]
    %v1351 = vperm.slane %v1349, 0
    %v1369 = vunpack.c.l.b16 %v1333
    %v1370 = vunpack.c.l.b16 %v1334
    %v1371 = vunpack.c.l.b16 %v1335
    %v1372 = vunpack.c.l.b16 %v1336
    %v1373 = vunpack.c.l.b16 %v1337
    %v1374 = vunpack.c.l.b16 %v1338
    %v1375 = vunpack.c.l.b16 %v1339
    %v1376 = vunpack.c.l.b16 %v1340
    %v1377 = vunpack.c.l.b16 %v1341
    %v1378 = vunpack.c.l.b16 %v1342
    %v1379 = vunpack.c.l.b16 %v1343
    %v1380 = vunpack.c.l.b16 %v1344
    %v1381 = vunpack.c.l.b16 %v1345
    %v1382 = vunpack.c.l.b16 %v1346
    %v1383 = vunpack.c.l.b16 %v1347
    %v1384 = vunpack.c.l.b16 %v1348
    %v1385 = vpack.c.b16 %v1370, %v1369
    %v1386 = vpack.c.b16 %v1372, %v1371
    %v1387 = vpack.c.b16 %v1374, %v1373
    %v1388 = vpack.c.b16 %v1376, %v1375
    %v1389 = vpack.c.b16 %v1378, %v1377
    %v1390 = vpack.c.b16 %v1380, %v1379
    %v1391 = vpack.c.b16 %v1382, %v1381
    %v1392 = vpack.c.b16 %v1384, %v1383
    %1401 = vmatpush.bf16.msra.mxu0 %v1392
    %1402 = vmatpush.bf16.msra.mxu0 %v1391
    %1403 = vmatpush.bf16.msra.mxu0 %v1390
    %1404 = vmatpush.bf16.msra.mxu0 %v1389
    %1405 = vmatpush.bf16.msra.mxu0 %v1388
    %1406 = vmatpush.bf16.msra.mxu0 %v1387
    %1407 = vmatpush.bf16.msra.mxu0 %v1386
    %1408 = vmatpush.bf16.msra.mxu0 %v1385
    %1409 = vmatmul.bf16.gmra.mxu0 %v1332
    %v1410 = vpop.f32.mrf.mxu0
    %v1411 = vadd.f32 %v1351, %v1410
    %v1412 = vpop.f32.mrf.mxu0
    %1413 = vdwg.mxu0
    %vm1414 = vcmp.gt.f32.partialorder %v1411, 0.0
    %v1415 = vmul.f32 %v1411, 0.01
    %v1416 = vsel %vm1414, %v1411, %v1415
    %v1417 = vpack.c.bf16 %v1416, %v1416
    %v1418 = vld [vmem:[#allocation8] sm:$0xf]
    %v1419 = vld [vmem:[#allocation8 + $0x4] sm:$0xf]
    %v1420 = vld [vmem:[#allocation8 + $0x8] sm:$0xf]
    %v1421 = vld [vmem:[#allocation8 + $0xc] sm:$0xf]
    %v1422 = vld [vmem:[#allocation8 + $0x10] sm:$0xf]
    %v1423 = vld [vmem:[#allocation8 + $0x14] sm:$0xf]
    %v1424 = vld [vmem:[#allocation8 + $0x18] sm:$0xf]
    %v1425 = vld [vmem:[#allocation8 + $0x1c] sm:$0xf]
    %v1426 = vld [vmem:[#allocation8 + $0x20] sm:$0xf]
    %v1427 = vld [vmem:[#allocation8 + $0x24] sm:$0xf]
    %v1428 = vld [vmem:[#allocation8 + $0x28] sm:$0xf]
    %v1429 = vld [vmem:[#allocation8 + $0x2c] sm:$0xf]
    %v1430 = vld [vmem:[#allocation8 + $0x30] sm:$0xf]
    %v1431 = vld [vmem:[#allocation8 + $0x34] sm:$0xf]
    %v1432 = vld [vmem:[#allocation8 + $0x38] sm:$0xf]
    %v1433 = vld [vmem:[#allocation8 + $0x3c] sm:$0xf]
    %v1434 = vld [vmem:[%s6] sm:$0x1]
    %v1436 = vperm.slane %v1434, 0
    %v1454 = vunpack.c.l.b16 %v1418
    %v1455 = vunpack.c.l.b16 %v1419
    %v1456 = vunpack.c.l.b16 %v1420
    %v1457 = vunpack.c.l.b16 %v1421
    %v1458 = vunpack.c.l.b16 %v1422
    %v1459 = vunpack.c.l.b16 %v1423
    %v1460 = vunpack.c.l.b16 %v1424
    %v1461 = vunpack.c.l.b16 %v1425
    %v1462 = vunpack.c.l.b16 %v1426
    %v1463 = vunpack.c.l.b16 %v1427
    %v1464 = vunpack.c.l.b16 %v1428
    %v1465 = vunpack.c.l.b16 %v1429
    %v1466 = vunpack.c.l.b16 %v1430
    %v1467 = vunpack.c.l.b16 %v1431
    %v1468 = vunpack.c.l.b16 %v1432
    %v1469 = vunpack.c.l.b16 %v1433
    %v1470 = vpack.c.b16 %v1455, %v1454
    %v1471 = vpack.c.b16 %v1457, %v1456
    %v1472 = vpack.c.b16 %v1459, %v1458
    %v1473 = vpack.c.b16 %v1461, %v1460
    %v1474 = vpack.c.b16 %v1463, %v1462
    %v1475 = vpack.c.b16 %v1465, %v1464
    %v1476 = vpack.c.b16 %v1467, %v1466
    %v1477 = vpack.c.b16 %v1469, %v1468
    %1486 = vmatpush.bf16.msra.mxu0 %v1477
    %1487 = vmatpush.bf16.msra.mxu0 %v1476
    %1488 = vmatpush.bf16.msra.mxu0 %v1475
    %1489 = vmatpush.bf16.msra.mxu0 %v1474
    %1490 = vmatpush.bf16.msra.mxu0 %v1473
    %1491 = vmatpush.bf16.msra.mxu0 %v1472
    %1492 = vmatpush.bf16.msra.mxu0 %v1471
    %1493 = vmatpush.bf16.msra.mxu0 %v1470
    %1494 = vmatmul.bf16.gmra.mxu0 %v1417
    %v1495 = vpop.f32.mrf.mxu0
    %v1496 = vadd.f32 %v1436, %v1495
    %v1497 = vpop.f32.mrf.mxu0
    %1498 = vdwg.mxu0
    %v1499 = vpack.c.bf16 %v1496, %v1496
    %1500 = vst [vmem:[#allocation10] sm:$0xf] %v1499
    // Predicated region
    $region46: #{tpu_custom_call.1} parent=1 // pred_check
      _
    $region47: #{tpu_custom_call.1} parent=1 // pred_check_branch
      %1502 = sbr.rel (0) target = $region49
    $region48: #{tpu_custom_call.1} parent=1 // pred_region
      %1504 = vsyncadd [#allocation4], 0
      %s1506 = sshll.u32 [#allocation10], 4
      %s1507 = int_to_ptr.vmem [resolvable:$true] %s1506
      %s1508 = sshll.u32 %s7, 4
      %s1509 = int_to_ptr.hbm [resolvable:$true] %s1508
      %1511 = dma.vmem_to_hbm [thread:$0]  %s1507, 64, %s1509, [#allocation4]
    $region49: #{tpu_custom_call.1} parent=1 // pred_fallthru
      _
    // Predicated region
    $region50: #{tpu_custom_call.1} parent=1 // pred_check
      _
    $region51: #{tpu_custom_call.1} parent=1 // pred_check_branch
      %1513 = sbr.rel (0) target = $region53
    $region52: #{tpu_custom_call.1} parent=1 // pred_region
      %1515 = dma.done [#allocation4], 64
    $region53: #{tpu_custom_call.1} parent=1 // pred_fallthru
      _
    %1516 = vsyncpa [#allocation3], 1
    %1517 = vsyncpa [#allocation6], 1
    %1518 = vsyncpa [#allocation9], 1
    %1519 = vsyncpa [#allocation4], 1

</llo_original>
